<compile_context>
chip_gen: v5e
topology: v5e:2x2
jax: 0.10.0
libtpu: 0.0.40
codegen_flags: <defaults>
</compile_context>

<pallas_src>
import functools

import jax
import jax.numpy as jnp
from jax.experimental import pallas as pl
from jax.experimental.pallas import tpu as pltpu


def _round_up(x, m):
    return ((x + m - 1) // m) * m


def layer_kernel(x_ref, w_ref, b_ref, o_ref):
    # One (tm, nin) @ (nin, tn) MXU matmul per grid step, f32 accumulate.
    acc = jnp.dot(x_ref[...], w_ref[...], preferred_element_type=jnp.float32)
    # Bias add (VPU) + tanh (EUP) co-issue in free slots; lane-dense store.
    o_ref[...] = jnp.tanh(acc + b_ref[...])


def prepare_layer_params(w, b, *, dtype=jnp.float32):
    """Pad/cast the Layer parameters ONCE (reuse the result across forward calls).

    w: (nin, nout), b: (nout,)  ->  w_p: (nin, nout_p) in `dtype`,
                                    b_p: (1, nout_p) f32,  nout_p = ceil128(nout).
    Lane-dense nout padding => unmasked `vst` stores inside the kernel.
    """
    nin, nout = w.shape
    assert b.shape == (nout,)
    nout_p = _round_up(nout, 128)
    w_p = jnp.pad(w.astype(jnp.float32), ((0, 0), (0, nout_p - nout))).astype(dtype)
    b_p = jnp.pad(b.astype(jnp.float32), (0, nout_p - nout)).reshape(1, nout_p)
    return w_p, b_p


def layer_apply(x, w_p, b_p, nout, *, tm=256, tn=512):
    """Batched micrograd Layer forward with pre-padded params: tanh(x @ W + b).

    x: (B, nin); w_p/b_p from prepare_layer_params; returns (B, nout) f32.
    tm: row tile (256 for v6e/v7x MXU rows, use 128 on v5e), clamped to B.
    tn: nout tile (multiple of 128) bounding the resident W block.
    """
    B, nin = x.shape
    nin_w, nout_p = w_p.shape
    assert nin == nin_w and b_p.shape == (1, nout_p) and nout_p % 128 == 0

    compute_dtype = w_p.dtype
    x = x.astype(compute_dtype)
    itemsize = jnp.dtype(compute_dtype).itemsize
    sub = 8 * (4 // itemsize)          # sublane minimum: 8 (f32) / 16 (bf16)
    tm = _round_up(tm, sub)
    tn = max(128, (tn // 128) * 128)

    # Pad B only to the sublane minimum; only tile rows if B exceeds tm.
    b_rows = _round_up(max(B, 1), sub)
    if b_rows <= tm:
        tm_eff = b_rows                # single row tile == full array, no waste
    else:
        tm_eff = tm
        b_rows = _round_up(b_rows, tm_eff)
    if b_rows > B:
        x = jnp.pad(x, ((0, b_rows - B), (0, 0)))

    # Largest nout tile <= tn that divides nout_p (128 always divides nout_p).
    if nout_p <= tn:
        tn_eff = nout_p
    else:
        tn_eff = next(t for t in range(tn, 0, -128) if nout_p % t == 0)

    grid = (b_rows // tm_eff, nout_p // tn_eff)

    cost = pl.CostEstimate(
        flops=2 * b_rows * nin * nout_p,
        transcendentals=b_rows * nout_p,
        bytes_accessed=(b_rows * nin * itemsize + nin * nout_p * itemsize
                        + nout_p * 4 + b_rows * nout_p * 4),
    )

    # Double-buffered per-step block footprint; raise the scoped VMEM limit only
    # when the default budget would be exceeded (tn/tm tiling keeps this bounded).
    block_bytes = 2 * (tm_eff * nin * itemsize + nin * tn_eff * itemsize
                       + tn_eff * 4 + tm_eff * tn_eff * 4)
    vmem_limit = int(block_bytes * 3 // 2) if block_bytes > (28 << 20) else None

    out = pl.pallas_call(
        layer_kernel,
        out_shape=jax.ShapeDtypeStruct((b_rows, nout_p), jnp.float32),
        grid=grid,
        in_specs=[
            pl.BlockSpec((tm_eff, nin), lambda i, j: (i, 0)),    # row tile of x
            pl.BlockSpec((nin, tn_eff), lambda i, j: (0, j)),    # W column tile
            pl.BlockSpec((1, tn_eff), lambda i, j: (0, j)),      # bias tile
        ],
        out_specs=pl.BlockSpec((tm_eff, tn_eff), lambda i, j: (i, j)),
        compiler_params=pltpu.CompilerParams(
            # Both axes independent -> shardable across v7x's two TensorCores.
            dimension_semantics=("parallel", "parallel"),
            vmem_limit_bytes=vmem_limit,
        ),
        cost_estimate=cost,
    )(x, w_p, b_p)
    return out[:B, :nout]


def layer_forward(x, w, b, *, dtype=jnp.float32, **kw):
    """Original Layer.forward semantics: x (nin,) -> (1, nout).

    Convenience path (pads params per call). For hot loops, call
    prepare_layer_params once and use layer_apply directly.
    """
    w_p, b_p = prepare_layer_params(w, b, dtype=dtype)
    return layer_apply(x[None, :], w_p, b_p, w.shape[1], **kw)


def init_layer_params(key, nin, nout):
    # Mirrors Neuron.__init__: w_j[k] ~ U(-1, 1) * nin**-0.5, b_j = 0.
    w = jax.random.uniform(key, (nin, nout), minval=-1.0, maxval=1.0,
                           dtype=jnp.float32) * (nin ** -0.5)
    b = jnp.zeros((nout,), dtype=jnp.float32)
    return w, b


if __name__ == "__main__":
    nin, nout = 32, 16
    batch = 4

    key = jax.random.PRNGKey(0)
    kx, kw = jax.random.split(key)

    xb = jax.random.normal(kx, (batch, nin), dtype=jnp.float32)
    w, b = init_layer_params(kw, nin, nout)
    yb_ref = jnp.tanh(xb @ w + b[None, :])

    fwd = jax.jit(functools.partial(layer_apply, nout=nout))

    # --- f32 path: pad/cast params once, reuse across calls ---
    w_p, b_p = prepare_layer_params(w, b, dtype=jnp.float32)
    yb = jax.block_until_ready(fwd(xb, w_p, b_p))
    assert yb.shape == (batch, nout)
    assert jnp.allclose(yb, yb_ref, atol=1e-6, rtol=1e-6)

    # --- bf16 params/x: halves W/x HBM traffic, f32 accumulate (looser tol) ---
    w_bp, b_bp = prepare_layer_params(w, b, dtype=jnp.bfloat16)
    yb16 = jax.block_until_ready(fwd(xb, w_bp, b_bp))
    assert yb16.shape == (batch, nout)
    assert jnp.allclose(yb16, yb_ref, atol=2e-2, rtol=2e-2)

    # --- original module semantics: x (nin,) -> (1, nout) ---
    y1 = jax.block_until_ready(layer_forward(xb[0], w, b))
    y1_ref = jnp.tanh(xb[0].reshape(1, nin) @ w + b.reshape(1, nout))
    assert y1.shape == (1, nout)
    assert jnp.allclose(y1, y1_ref, atol=1e-6, rtol=1e-6)

    print("KERNEL_OK")
</pallas_src>

<mosaic_0001>
module attributes {stable_mosaic.version = 11 : i64} {
  func.func @layer_kernel(%arg0: i32, %arg1: i32, %arg2: memref<8x32xf32, #tpu.memory_space<vmem>>, %arg3: memref<32x128xf32, #tpu.memory_space<vmem>>, %arg4: memref<1x128xf32, #tpu.memory_space<vmem>>, %arg5: memref<8x128xf32, #tpu.memory_space<vmem>>) attributes {dimension_semantics = [#tpu.dimension_semantics<parallel>, #tpu.dimension_semantics<parallel>], iteration_bounds = array<i64: 1, 1>, scalar_prefetch = 0 : i64, scratch_operands = 0 : i64, tpu.core_type = #tpu.core_type<tc>, window_params = [{transform_indices = @transform_0, window_bounds = array<i64: 8, 32>}, {transform_indices = @transform_1, window_bounds = array<i64: 32, 128>}, {transform_indices = @transform_2, window_bounds = array<i64: 1, 128>}, {transform_indices = @transform_3, window_bounds = array<i64: 8, 128>}]} {
    %c0 = arith.constant 0 : index
    %c0_0 = arith.constant 0 : index
    %0 = vector.load %arg2[%c0, %c0_0] : memref<8x32xf32, #tpu.memory_space<vmem>>, vector<8x32xf32>
    %c0_1 = arith.constant 0 : index
    %c0_2 = arith.constant 0 : index
    %1 = vector.load %arg3[%c0_1, %c0_2] : memref<32x128xf32, #tpu.memory_space<vmem>>, vector<32x128xf32>
    %cst = arith.constant dense<0.000000e+00> : vector<8x128xf32>
    %2 = tpu.matmul %0, %1, %cst {dimension_numbers = #tpu.dot_dimension_numbers<[1], [0], [0], [1], [0, 0, 1, 1], [], []>} : vector<8x32xf32>, vector<32x128xf32>, vector<8x128xf32> -> vector<8x128xf32>
    %c0_3 = arith.constant 0 : index
    %c0_4 = arith.constant 0 : index
    %3 = vector.load %arg4[%c0_3, %c0_4] : memref<1x128xf32, #tpu.memory_space<vmem>>, vector<1x128xf32>
    %4 = vector.broadcast %3 : vector<1x128xf32> to vector<8x128xf32>
    %5 = arith.addf %2, %4 : vector<8x128xf32>
    %6 = math.tanh %5 : vector<8x128xf32>
    %c0_5 = arith.constant 0 : index
    %c0_6 = arith.constant 0 : index
    %7 = vector.load %arg5[%c0_5, %c0_6] : memref<8x128xf32, #tpu.memory_space<vmem>>, vector<8x128xf32>
    tpu.vector_store %arg5[%c0_5, %c0_6], %6 {strides = array<i32>} : memref<8x128xf32, #tpu.memory_space<vmem>>, vector<8x128xf32>,
    return
  }
  func.func @transform_0(%arg0: i32, %arg1: i32) -> (i32, i32) {
    %c0_i32 = arith.constant 0 : i32
    %c0_i32_0 = arith.constant 0 : i32
    return %arg0, %c0_i32 : i32, i32
  }
  func.func @transform_1(%arg0: i32, %arg1: i32) -> (i32, i32) {
    %c0_i32 = arith.constant 0 : i32
    %c0_i32_0 = arith.constant 0 : i32
    return %c0_i32, %arg1 : i32, i32
  }
  func.func @transform_2(%arg0: i32, %arg1: i32) -> (i32, i32) {
    %c0_i32 = arith.constant 0 : i32
    %c0_i32_0 = arith.constant 0 : i32
    return %c0_i32, %arg1 : i32, i32
  }
  func.func @transform_3(%arg0: i32, %arg1: i32) -> (i32, i32) {
    %c0_i32 = arith.constant 0 : i32
    return %arg0, %arg1 : i32, i32
  }
}

</mosaic_0001>

<llo_original>
// kernel: layer_apply.1
$region0: #{layer_apply.1}
  #allocation0 [shape = 'u32[]', space=smem, size = 0x4, offset = 0x4, fixed_abs, tag = 'smem constant byte address 0x4 - core index']
  #allocation1 [shape = 'u32[72,128]{1,0:T(1,128)}', space=vmem, size = 0x9000, scoped, tag = 'internal scratch']
  %s0 = inlined_call_operand.vmem [shape: f32[8,32], index: 0, kind: input, shape index: {}]
  %s1 = inlined_call_operand.hbm [shape: f32[32,128], index: 1, kind: input, shape index: {}]
  %s2 = inlined_call_operand.vmem [shape: f32[1,128], index: 2, kind: input, shape index: {}]
  %s3 = inlined_call_operand.vmem [shape: f32[8,128], index: 3, kind: output, shape index: {}]
  %s4 = sld [smem:[#allocation0]]
  $region26: #{layer_apply.1} parent=0
    _
  %s6 = ssub.s32 1, %s4
  %s7 = scalar_select 0, %s6, %s4
  $region1: #{layer_apply.1} parent=0
    #allocation2 [shape = 'u8[16384]{0}', space=vmem, size = 0x4000, scoped, tag = 'input window, operand 1, single buffered']
    #allocation3 [shape = 's32[1]{0}', space=sflag, size = 0x4, scoped, tag = 'scoped memory for layer_apply.1']
    %8 = vsyncpa [#allocation3], 0
    // Predicated region
    $region2: #{layer_apply.1} parent=1 // pred_check
      _
    $region3: #{layer_apply.1} parent=1 // pred_check_branch
      %10 = sbr.rel (0) target = $region5
    $region4: #{layer_apply.1} parent=1 // pred_region
      _
    $region5: #{layer_apply.1} parent=1 // pred_fallthru
      _
    // Predicated region
    $region6: #{layer_apply.1} parent=1 // pred_check
      _
    $region7: #{layer_apply.1} parent=1 // pred_check_branch
      %12 = sbr.rel (0) target = $region9
    $region8: #{layer_apply.1} parent=1 // pred_region
      %14 = vsyncadd [#allocation3], 0
      %s15 = sshll.u32 %s1, 4
      %s16 = int_to_ptr.hbm [resolvable:$true] %s15
      %s17 = sshll.u32 [#allocation2], 4
      %s18 = int_to_ptr.vmem [resolvable:$true] %s17
      %23 = dma.hbm_to_vmem [thread:$0]  %s16, 512, %s18, [#allocation3], 128, 128, 8
    $region9: #{layer_apply.1} parent=1 // pred_fallthru
      _
    // Predicated region
    $region10: #{layer_apply.1} parent=1 // pred_check
      _
    $region11: #{layer_apply.1} parent=1 // pred_check_branch
      %25 = sbr.rel (0) target = $region13
    $region12: #{layer_apply.1} parent=1 // pred_region
      _
    $region13: #{layer_apply.1} parent=1 // pred_fallthru
      _
    // Predicated region
    $region14: #{layer_apply.1} parent=1 // pred_check
      _
    $region15: #{layer_apply.1} parent=1 // pred_check_branch
      %27 = sbr.rel (0) target = $region17
    $region16: #{layer_apply.1} parent=1 // pred_region
      %29 = dma.done [#allocation3], 512
    $region17: #{layer_apply.1} parent=1 // pred_fallthru
      _
    %v30 = vld [vmem:[%s0] sm:$0xff]
    %v31 = vld [vmem:[#allocation2] sm:$0xff]
    %v32 = vld [vmem:[#allocation2 + $0x8] sm:$0xff]
    %v33 = vld [vmem:[#allocation2 + $0x10] sm:$0xff]
    %v34 = vld [vmem:[#allocation2 + $0x18] sm:$0xff]
    %v35 = vld [vmem:[%s2] sm:$0x1]
    %v37 = vperm.slane %v35, 0
    %vm39 = vcmask 261120
    %v41 = vsel %vm39, %v30, 0
    %43 = vmatpush.msra.mxu0 0.0
    %44 = vmatpush.msra.mxu0 0.0
    %45 = vmatpush.msra.mxu0 0.0
    %46 = vmatpush.msra.mxu0 0.0
    %47 = vmatpush.msra.mxu0 0.0
    %48 = vmatpush.msra.mxu0 0.0
    %49 = vmatpush.msra.mxu0 0.0
    %50 = vmatpush.msra.mxu0 0.0
    %51 = vmatpush.msra.mxu0 0.0
    %52 = vmatpush.msra.mxu0 0.0
    %53 = vmatpush.msra.mxu0 0.0
    %54 = vmatpush.msra.mxu0 0.0
    %55 = vmatpush.msra.mxu0 %v34
    %56 = vmatpush.msra.mxu0 %v33
    %57 = vmatpush.msra.mxu0 %v32
    %58 = vmatpush.msra.mxu0 %v31
    %59 = vmatmul.f32.gmra.mxu0 %v41
    %v60 = vpop.f32.mrf.mxu0
    %v61 = vadd.f32 %v37, %v60
    %62 = vdwg.mxu0
    %v63 = vtanh.pop %v61
    %64 = vst [vmem:[%s3] sm:$0xff] %v63
    // Predicated region
    $region18: #{layer_apply.1} parent=1 // pred_check
      _
    $region19: #{layer_apply.1} parent=1 // pred_check_branch
      %66 = sbr.rel (0) target = $region21
    $region20: #{layer_apply.1} parent=1 // pred_region
      _
    $region21: #{layer_apply.1} parent=1 // pred_fallthru
      _
    // Predicated region
    $region22: #{layer_apply.1} parent=1 // pred_check
      _
    $region23: #{layer_apply.1} parent=1 // pred_check_branch
      %68 = sbr.rel (0) target = $region25
    $region24: #{layer_apply.1} parent=1 // pred_region
      _
    $region25: #{layer_apply.1} parent=1 // pred_fallthru
      _
    %69 = vsyncpa [#allocation3], 1

</llo_original>
